<compile_context>
chip_gen: v6e
topology: v6e:2x2x1
jax: 0.10.0
libtpu: 0.0.40
codegen_flags: <defaults>
</compile_context>

<pallas_src>
import jax
import jax.numpy as jnp
from jax.experimental import pallas as pl
from jax.experimental.pallas import tpu as pltpu

LN_EPS = 1e-5  # PyTorch nn.LayerNorm default


def _round_up(x, m):
    return (x + m - 1) // m * m


def _decoder_ln_kernel(x_ref, w_ref, b_ref, o_ref):
    # x_ref: [tile_n, D] row tile of flattened tokens (partial at the edge).
    # w_ref: [D, O] f32/bf16   folded weight  gamma[:,None] * W^T   (resident)
    # b_ref: [1, O] f32        folded bias    b + beta @ W^T        (resident)
    # o_ref: [tile_n, O]
    xf = x_ref[...].astype(jnp.float32)

    # LayerNorm statistics over the feature (lane) axis, biased variance.
    mean = jnp.mean(xf, axis=-1, keepdims=True)
    centered = xf - mean
    var = jnp.mean(centered * centered, axis=-1, keepdims=True)
    xn = centered * jax.lax.rsqrt(var + LN_EPS)

    y = jnp.dot(xn.astype(w_ref.dtype), w_ref[...],
                preferred_element_type=jnp.float32)
    o_ref[...] = (y + b_ref[...]).astype(o_ref.dtype)


def _decoder_linear_kernel(x_ref, w_ref, b_ref, o_ref):
    # Linear-only path (use_layer_norm=False).
    y = jnp.dot(x_ref[...].astype(w_ref.dtype), w_ref[...],
                preferred_element_type=jnp.float32)
    o_ref[...] = (y + b_ref[...]).astype(o_ref.dtype)


def prepare_decoder_params(ln_gamma, ln_beta, w, b, *, use_layer_norm=True,
                           compute_dtype=jnp.float32):
    """One-time parameter prep: W' = gamma*W^T folded, b' = b + beta@W^T."""
    O, D = w.shape
    wt = w.T.astype(jnp.float32)                        # [D, O]
    bias = b.astype(jnp.float32).reshape(1, O)          # [1, O]
    if use_layer_norm:
        bias = bias + ln_beta.astype(jnp.float32).reshape(1, D) @ wt
        wt = ln_gamma.astype(jnp.float32)[:, None] * wt
    return wt.astype(compute_dtype), bias


def decoder_apply(x, wt, bias, *, use_layer_norm=True, tile_n_max=4096):
    """x: [B, S, D];  wt: [D, O] folded weight;  bias: [1, O];  -> [B, S, O]."""
    B, S, D = x.shape
    O = wt.shape[1]
    N = B * S
    x2d = x.reshape(N, D)

    x_item = jnp.dtype(x.dtype).itemsize
    w_item = jnp.dtype(wt.dtype).itemsize

    # Dtype-aware sublane multiple: 8 (f32), 16 (bf16), 32 (int8).
    sub = max(8, 32 // x_item)
    # Large tiles to amortize per-step overhead, but keep >= 2 grid steps when
    # possible so the "parallel" axis shards across both v7x TensorCores.
    tile_n = max(sub, min(tile_n_max, _round_up(pl.cdiv(N, 2), sub)))
    grid_n = pl.cdiv(N, tile_n)  # partial last block; no input padding

    # VMEM budget: double-buffered streaming x/out tiles + resident params,
    # capped by the physical capacity of the current chip (v7x = 64 MiB).
    est = (2 * tile_n * D * x_item          # x tile (double-buffered)
           + 2 * tile_n * O * x_item        # out tile (double-buffered)
           + D * O * w_item + O * 4)        # resident folded weight + bias
    try:
        vmem_cap = pltpu.get_tpu_info().vmem_capacity_bytes
    except Exception:
        vmem_cap = 64 * 1024 * 1024
    vmem_limit = int(min(int(0.85 * vmem_cap),
                         max(32 * 1024 * 1024, 2 * est)))

    cost = pl.CostEstimate(
        flops=2 * N * D * O + (7 * N * D if use_layer_norm else 0),
        transcendentals=N if use_layer_norm else 0,
        bytes_accessed=N * D * x_item + N * O * x_item + D * O * w_item + O * 4,
    )

    kernel = _decoder_ln_kernel if use_layer_norm else _decoder_linear_kernel

    out2d = pl.pallas_call(
        kernel,
        out_shape=jax.ShapeDtypeStruct((N, O), x.dtype),
        grid=(grid_n,),
        in_specs=[
            pl.BlockSpec((tile_n, D), lambda i: (i, 0)),   # streamed row tiles
            pl.BlockSpec((D, O), lambda i: (0, 0)),        # folded W' (resident)
            pl.BlockSpec((1, O), lambda i: (0, 0)),        # folded bias (resident)
        ],
        out_specs=pl.BlockSpec((tile_n, O), lambda i: (i, 0)),
        compiler_params=pltpu.CompilerParams(
            dimension_semantics=("parallel",),
            vmem_limit_bytes=vmem_limit,
        ),
        cost_estimate=cost,
    )(x2d, wt, bias)

    return out2d.reshape(B, S, O)


def decoder_forward(x, ln_gamma, ln_beta, w, b, *,
                    use_layer_norm=True, tile_n_max=4096):
    """Convenience one-shot API: x [B,S,D], w [O,D] (PyTorch Linear layout)."""
    wt, bias = prepare_decoder_params(ln_gamma, ln_beta, w, b,
                                      use_layer_norm=use_layer_norm,
                                      compute_dtype=x.dtype)
    return decoder_apply(x, wt, bias, use_layer_norm=use_layer_norm,
                         tile_n_max=tile_n_max)


if __name__ == "__main__":
    # model_config stand-ins: d_model=32, num_return_buckets=16, layernorm on.
    B, S, D, O = 2, 8, 32, 16
    key = jax.random.PRNGKey(0)
    kx, kw, kb, kg, kbt = jax.random.split(key, 5)

    x = jax.random.normal(kx, (B, S, D), dtype=jnp.float32)

    # Non-trivial LayerNorm affine so the fold is actually exercised.
    ln_gamma = 1.0 + 0.1 * jax.random.normal(kg, (D,), jnp.float32)
    ln_beta = 0.1 * jax.random.normal(kbt, (D,), jnp.float32)
    bound = 1.0 / (D ** 0.5)
    w = jax.random.uniform(kw, (O, D), jnp.float32, -bound, bound)  # [out, in]
    b = jax.random.uniform(kb, (O,), jnp.float32, -bound, bound)

    # --- LayerNorm + Linear path ---
    out = jax.block_until_ready(
        decoder_forward(x, ln_gamma, ln_beta, w, b, use_layer_norm=True))
    mean = jnp.mean(x, axis=-1, keepdims=True)
    var = jnp.mean((x - mean) ** 2, axis=-1, keepdims=True)
    xn = (x - mean) / jnp.sqrt(var + LN_EPS) * ln_gamma + ln_beta
    ref = xn @ w.T + b
    assert out.shape == (B, S, O)
    assert jnp.allclose(out, ref, atol=1e-4, rtol=1e-4)

    # --- Linear-only path (decoder_layernorm=False) ---
    out_nl = jax.block_until_ready(
        decoder_forward(x, ln_gamma, ln_beta, w, b, use_layer_norm=False))
    ref_nl = x @ w.T + b
    assert out_nl.shape == (B, S, O)
    assert jnp.allclose(out_nl, ref_nl, atol=1e-4, rtol=1e-4)

    # --- Ragged token count: exercises the partial last block (no input pad) ---
    B2, S2 = 3, 5
    x2 = jax.random.normal(kx, (B2, S2, D), dtype=jnp.float32)
    out2 = jax.block_until_ready(
        decoder_forward(x2, ln_gamma, ln_beta, w, b, use_layer_norm=True))
    mean2 = jnp.mean(x2, axis=-1, keepdims=True)
    var2 = jnp.mean((x2 - mean2) ** 2, axis=-1, keepdims=True)
    ref2 = ((x2 - mean2) / jnp.sqrt(var2 + LN_EPS) * ln_gamma + ln_beta) @ w.T + b
    assert out2.shape == (B2, S2, O)
    assert jnp.allclose(out2, ref2, atol=1e-4, rtol=1e-4)

    print("KERNEL_OK")
</pallas_src>

<mosaic_0001>
module attributes {stable_mosaic.version = 11 : i64} {
  func.func @_decoder_ln_kernel(%arg0: i32, %arg1: memref<8x32xf32, #tpu.memory_space<vmem>>, %arg2: memref<32x16xf32, #tpu.memory_space<vmem>>, %arg3: memref<1x16xf32, #tpu.memory_space<vmem>>, %arg4: memref<8x16xf32, #tpu.memory_space<vmem>>) attributes {dimension_semantics = [#tpu.dimension_semantics<parallel>], iteration_bounds = array<i64: 2>, scalar_prefetch = 0 : i64, scratch_operands = 0 : i64, tpu.core_type = #tpu.core_type<tc>, window_params = [{transform_indices = @transform_0, window_bounds = array<i64: 8, 32>}, {pipeline_mode = #tpu.pipeline_mode<synchronous>, transform_indices = @transform_1, window_bounds = array<i64: 32, 16>}, {pipeline_mode = #tpu.pipeline_mode<synchronous>, transform_indices = @transform_2, window_bounds = array<i64: 1, 16>}, {transform_indices = @transform_3, window_bounds = array<i64: 8, 16>}]} {
    %c0 = arith.constant 0 : index
    %c0_0 = arith.constant 0 : index
    %0 = vector.load %arg1[%c0, %c0_0] : memref<8x32xf32, #tpu.memory_space<vmem>>, vector<8x32xf32>
    %cst = arith.constant dense<0.000000e+00> : vector<8xf32>
    %1 = vector.multi_reduction <add>, %0, %cst [1] : vector<8x32xf32> to vector<8xf32>
    %2 = vector.shape_cast %1 : vector<8xf32> to vector<8x1xf32>
    %cst_1 = arith.constant 3.200000e+01 : f32
    %3 = vector.broadcast %cst_1 : f32 to vector<8x1xf32>
    %4 = arith.divf %2, %3 : vector<8x1xf32>
    %5 = vector.broadcast %4 : vector<8x1xf32> to vector<8x32xf32>
    %6 = arith.subf %0, %5 : vector<8x32xf32>
    %7 = arith.mulf %6, %6 : vector<8x32xf32>
    %cst_2 = arith.constant dense<0.000000e+00> : vector<8xf32>
    %8 = vector.multi_reduction <add>, %7, %cst_2 [1] : vector<8x32xf32> to vector<8xf32>
    %9 = vector.shape_cast %8 : vector<8xf32> to vector<8x1xf32>
    %cst_3 = arith.constant 3.200000e+01 : f32
    %10 = vector.broadcast %cst_3 : f32 to vector<8x1xf32>
    %11 = arith.divf %9, %10 : vector<8x1xf32>
    %cst_4 = arith.constant 9.99999974E-6 : f32
    %12 = vector.broadcast %cst_4 : f32 to vector<8x1xf32>
    %13 = arith.addf %11, %12 : vector<8x1xf32>
    %14 = math.rsqrt %13 : vector<8x1xf32>
    %15 = vector.broadcast %14 : vector<8x1xf32> to vector<8x32xf32>
    %16 = arith.mulf %6, %15 : vector<8x32xf32>
    %c0_5 = arith.constant 0 : index
    %c0_6 = arith.constant 0 : index
    %17 = vector.load %arg2[%c0_5, %c0_6] : memref<32x16xf32, #tpu.memory_space<vmem>>, vector<32x16xf32>
    %cst_7 = arith.constant dense<0.000000e+00> : vector<8x16xf32>
    %18 = tpu.matmul %16, %17, %cst_7 {dimension_numbers = #tpu.dot_dimension_numbers<[1], [0], [0], [1], [0, 0, 1, 1], [], []>} : vector<8x32xf32>, vector<32x16xf32>, vector<8x16xf32> -> vector<8x16xf32>
    %c0_8 = arith.constant 0 : index
    %c0_9 = arith.constant 0 : index
    %19 = vector.load %arg3[%c0_8, %c0_9] : memref<1x16xf32, #tpu.memory_space<vmem>>, vector<1x16xf32>
    %20 = vector.broadcast %19 : vector<1x16xf32> to vector<8x16xf32>
    %21 = arith.addf %18, %20 : vector<8x16xf32>
    %c0_10 = arith.constant 0 : index
    %c0_11 = arith.constant 0 : index
    %22 = vector.load %arg4[%c0_10, %c0_11] : memref<8x16xf32, #tpu.memory_space<vmem>>, vector<8x16xf32>
    tpu.vector_store %arg4[%c0_10, %c0_11], %21 {strides = array<i32>} : memref<8x16xf32, #tpu.memory_space<vmem>>, vector<8x16xf32>,
    return
  }
  func.func @transform_0(%arg0: i32) -> (i32, i32) {
    %c0_i32 = arith.constant 0 : i32
    %c0_i32_0 = arith.constant 0 : i32
    return %arg0, %c0_i32 : i32, i32
  }
  func.func @transform_1(%arg0: i32) -> (i32, i32) {
    %c0_i32 = arith.constant 0 : i32
    %c0_i32_0 = arith.constant 0 : i32
    %c0_i32_1 = arith.constant 0 : i32
    return %c0_i32, %c0_i32_0 : i32, i32
  }
  func.func @transform_2(%arg0: i32) -> (i32, i32) {
    %c0_i32 = arith.constant 0 : i32
    %c0_i32_0 = arith.constant 0 : i32
    %c0_i32_1 = arith.constant 0 : i32
    return %c0_i32, %c0_i32_0 : i32, i32
  }
  func.func @transform_3(%arg0: i32) -> (i32, i32) {
    %c0_i32 = arith.constant 0 : i32
    %c0_i32_0 = arith.constant 0 : i32
    return %arg0, %c0_i32 : i32, i32
  }
}

</mosaic_0001>

<llo_original>
// kernel: tpu_custom_call.1
$region0: #{tpu_custom_call.1}
  #allocation0 [shape = 'u32[]', space=smem, size = 0x4, offset = 0x4, fixed_abs, tag = 'smem constant byte address 0x4 - core index']
  #allocation1 [shape = 'u32[144,128]{1,0:T(1,128)}', space=vmem, size = 0x12000, scoped, tag = 'internal scratch']
  %s0 = inlined_call_operand.vmem [shape: f32[16,32], index: 0, kind: input, shape index: {}]
  %s1 = inlined_call_operand.vmem [shape: f32[32,16], index: 1, kind: input, shape index: {}]
  %s2 = inlined_call_operand.vmem [shape: f32[1,16], index: 2, kind: input, shape index: {}]
  %s3 = inlined_call_operand.hbm [shape: f32[16,16], index: 3, kind: output, shape index: {}]
  %s4 = sld [smem:[#allocation0]]
  $region45: #{tpu_custom_call.1} parent=0
    _
  %s6 = ssub.s32 1, %s4
  %s7 = scalar_select 0, %s6, %s4
  $region1: #{tpu_custom_call.1} parent=0
    #allocation2 [shape = 'u8[8192]{0}', space=vmem, size = 0x2000, scoped, tag = 'output window, operand 0']
    #allocation3 [shape = 's32[2]{0}', space=sflag, size = 0x8, scoped, tag = 'scoped memory for tpu_custom_call.1']
    %8 = vsyncpa [#allocation3], 0
    %s9 = scalar_lea.sflag [#allocation3], 1
    %10 = vsyncpa %s9, 0
    loop: start=0, step=1, limit=4
    $region2: #{tpu_custom_call.1} parent=1 // loop_pre_header
      _
    $region3: #{tpu_custom_call.1} parent=1 // loop_header
      %s12 = sphi 0, %s16
      %p13 = scmp.ge.s32.totalorder %s12, 4
      %s22 = sphi 0, %s24
      %s25 = sphi 0, %s22
      %s26 = sphi 0, %s25
      %s42 = sphi 0, %s26
      %s46 = sphi 0, %s46
      %s48 = sphi 0, %s46
      %s49 = sphi 0, %s48
      %s63 = sphi 0, %s49
      %s67 = sphi 0, %s67
      %s69 = sphi 0, %s67
      %s70 = sphi 0, %s69
      %s84 = sphi 0, %s70
      %s90 = sphi 0, %s92
      %s93 = sphi 0, %s90
      %s94 = sphi 0, %s93
      %s110 = sphi 0, %s94
    $region4: #{tpu_custom_call.1} parent=1 // loop_header_branch
      %15 = sbr.rel (%p13) target = $region8
    $region5: #{tpu_custom_call.1} parent=1 // loop_body
      %s17 = ssub.s32 %s12, 1
      %s18 = ssub.s32 %s12, 2
      %s19 = sadd.s32 %s12, 1
      %s20 = ssub.s32 %s12, %s19
      %p21 = scmp.eq.s32.totalorder %s20, 0
      %s23 = sadd.s32 %s22, 1
      %s24 = scalar_select %p21, %s22, %s23
      %p27 = pneg %p21
      %p28 = scmp.eq.s32.totalorder %s12, 1
      %p29 = por %p27, %p28
      %p30 = scmp.ne.s32.totalorder %s22, %s25
      %p31 = scmp.eq.s32.totalorder %s12, 0
      %p32 = por %p30, %p31
      %p33 = scmp.ne.s32.totalorder %s22, %s25
      %p34 = scmp.eq.s32.totalorder %s17, 1
      %p35 = por %p33, %p34
      %p36 = scmp.ne.s32.totalorder %s25, %s26
      %p37 = scmp.eq.s32.totalorder %s17, 0
      %p38 = por %p36, %p37
      %p39 = scmp.ne.s32.totalorder %s25, %s26
      %p40 = scmp.eq.s32.totalorder %s18, 1
      %p41 = por %p39, %p40
      %p43 = scmp.ne.s32.totalorder %s26, %s42
      %p44 = scmp.eq.s32.totalorder %s18, 0
      %p45 = por %p43, %p44
      %s47 = sadd.s32 %s46, 1
      %p50 = scmp.eq.s32.totalorder %s12, 1
      %p51 = scmp.ne.s32.totalorder %s46, %s48
      %p52 = scmp.eq.s32.totalorder %s12, 0
      %p53 = por %p51, %p52
      %p54 = scmp.ne.s32.totalorder %s46, %s48
      %p55 = scmp.eq.s32.totalorder %s17, 1
      %p56 = por %p54, %p55
      %p57 = scmp.ne.s32.totalorder %s48, %s49
      %p58 = scmp.eq.s32.totalorder %s17, 0
      %p59 = por %p57, %p58
      %p60 = scmp.ne.s32.totalorder %s48, %s49
      %p61 = scmp.eq.s32.totalorder %s18, 1
      %p62 = por %p60, %p61
      %p64 = scmp.ne.s32.totalorder %s49, %s63
      %p65 = scmp.eq.s32.totalorder %s18, 0
      %p66 = por %p64, %p65
      %s68 = sadd.s32 %s67, 1
      %p71 = scmp.eq.s32.totalorder %s12, 1
      %p72 = scmp.ne.s32.totalorder %s67, %s69
      %p73 = scmp.eq.s32.totalorder %s12, 0
      %p74 = por %p72, %p73
      %p75 = scmp.ne.s32.totalorder %s67, %s69
      %p76 = scmp.eq.s32.totalorder %s17, 1
      %p77 = por %p75, %p76
      %p78 = scmp.ne.s32.totalorder %s69, %s70
      %p79 = scmp.eq.s32.totalorder %s17, 0
      %p80 = por %p78, %p79
      %p81 = scmp.ne.s32.totalorder %s69, %s70
      %p82 = scmp.eq.s32.totalorder %s18, 1
      %p83 = por %p81, %p82
      %p85 = scmp.ne.s32.totalorder %s70, %s84
      %p86 = scmp.eq.s32.totalorder %s18, 0
      %p87 = por %p85, %p86
      %s88 = ssub.s32 %s12, %s19
      %p89 = scmp.eq.s32.totalorder %s88, 0
      %s91 = sadd.s32 %s90, 1
      %s92 = scalar_select %p89, %s90, %s91
      %p95 = pneg %p89
      %p96 = scmp.eq.s32.totalorder %s12, 1
      %p97 = por %p95, %p96
      %p98 = scmp.ne.s32.totalorder %s90, %s93
      %p99 = scmp.eq.s32.totalorder %s12, 0
      %p100 = por %p98, %p99
      %p101 = scmp.ne.s32.totalorder %s90, %s93
      %p102 = scmp.eq.s32.totalorder %s17, 1
      %p103 = por %p101, %p102
      %p104 = scmp.ne.s32.totalorder %s93, %s94
      %p105 = scmp.eq.s32.totalorder %s17, 0
      %p106 = por %p104, %p105
      %p107 = scmp.ne.s32.totalorder %s93, %s94
      %p108 = scmp.eq.s32.totalorder %s18, 1
      %p109 = por %p107, %p108
      %p111 = scmp.ne.s32.totalorder %s94, %s110
      %p112 = scmp.eq.s32.totalorder %s18, 0
      %p113 = por %p111, %p112
      %p114 = scmp.le.s32.totalorder 1, %s12
      %p115 = scmp.lt.s32.totalorder %s12, 3
      %p116 = pnand %p114, %p115
      %p117 = pneg %p116
      // Predicated region
      $region9: #{tpu_custom_call.1} parent=5 // pred_check
        _
      $region10: #{tpu_custom_call.1} parent=5 // pred_check_branch
        %119 = sbr.rel (%p116) target = $region12
      $region11: #{tpu_custom_call.1} parent=5 // pred_region
        %s120 = ssub.s32 %s12, 1
        // Predicated region
        $region13: #{tpu_custom_call.1} parent=11 // pred_check
          %p121 = pneg %p59
        $region14: #{tpu_custom_call.1} parent=11 // pred_check_branch
          %123 = sbr.rel (%p121) target = $region16
        $region15: #{tpu_custom_call.1} parent=11 // pred_region
          _
        $region16: #{tpu_custom_call.1} parent=11 // pred_fallthru
          _
        // Predicated region
        $region17: #{tpu_custom_call.1} parent=11 // pred_check
          %p124 = pneg %p80
        $region18: #{tpu_custom_call.1} parent=11 // pred_check_branch
          %126 = sbr.rel (%p124) target = $region20
        $region19: #{tpu_custom_call.1} parent=11 // pred_region
          _
        $region20: #{tpu_custom_call.1} parent=11 // pred_fallthru
          _
      $region12: #{tpu_custom_call.1} parent=5 // pred_fallthru
        _
      %p127 = scmp.lt.s32.totalorder %s12, 2
      // Predicated region
      $region21: #{tpu_custom_call.1} parent=5 // pred_check
        %p128 = pneg %p127
      $region22: #{tpu_custom_call.1} parent=5 // pred_check_branch
        %130 = sbr.rel (%p128) target = $region24
      $region23: #{tpu_custom_call.1} parent=5 // pred_region
        // Predicated region
        $region25: #{tpu_custom_call.1} parent=23 // pred_check
          %p131 = pneg %p32
        $region26: #{tpu_custom_call.1} parent=23 // pred_check_branch
          %133 = sbr.rel (%p131) target = $region28
        $region27: #{tpu_custom_call.1} parent=23 // pred_region
          %p134 = scmp.lt.s32.totalorder %s12, 1
          %s135 = scalar_select %p134, %s12, 1
          %s136 = smul.addr %s135, 8
          %s137 = scalar_lea.vmem %s0, %s136
        $region28: #{tpu_custom_call.1} parent=23 // pred_fallthru
          _
      $region24: #{tpu_custom_call.1} parent=5 // pred_fallthru
        _
      %p138 = scmp.le.s32.totalorder 1, %s12
      %p139 = scmp.lt.s32.totalorder %s12, 3
      %p140 = pnand %p138, %p139
      %p141 = pneg %p140
      // Predicated region
      $region29: #{tpu_custom_call.1} parent=5 // pred_check
        _
      $region30: #{tpu_custom_call.1} parent=5 // pred_check_branch
        %143 = sbr.rel (%p140) target = $region32
      $region31: #{tpu_custom_call.1} parent=5 // pred_region
        %s144 = ssub.s32 %s12, 1
        %p145 = scmp.lt.s32.totalorder %s17, 1
        %s146 = scalar_select %p145, %s17, 1
        %s147 = smul.addr %s146, 8
        %s148 = scalar_lea.vmem %s0, %s147
        %p149 = pneg %p38
        %p150 = pneg %p35
        %p151 = pneg %p59
        %p152 = pneg %p56
        %p153 = pneg %p80
        %p154 = pneg %p77
        %p155 = pneg %p106
        %p156 = pneg %p103
        %s157 = sand.u32 %s93, 1
        %s158 = scalar_lea.sflag [#allocation3], %s157
        %s159 = sand.u32 %s93, 1
        %s160 = smul.addr %s159, 8
        %s161 = scalar_lea.vmem [#allocation2], %s160
        %p162 = scmp.lt.s32.totalorder %s17, 1
        %s163 = scalar_select %p162, %s17, 1
        %s164 = smul.addr %s163, 8
        %s165 = scalar_lea.vmem %s0, %s164
        %v166 = vld [vmem:[%s165] sm:$0xff]
        %vm167 = vcmask 261120
        %v168 = vsel %vm167, %v166, 0.0
        %169 = vadd.xlane.f32.xlu0 %v168
        %v170 = vpop.xlane.xlu0 %169
        %v171 = vrcp.pop 32.0
        %v172 = vmul.f32 %v170, %v171
        %v173 = vsub.f32 %v166, %v172
        %v174 = vmul.f32 %v173, %v173
        %v175 = vsel %vm167, %v174, 0.0
        %176 = vadd.xlane.f32.xlu0 %v175
        %v177 = vpop.xlane.xlu0 %176
        %v178 = vmul.f32 %v177, %v171
        %v179 = vadd.f32 %v178, 1e-05
        %v180 = vrsqrt.pop %v179
        %v181 = vmul.f32 %v173, %v180
        %v182 = vld [vmem:[%s1] sm:$0xff]
        %v183 = vld [vmem:[%s1 + $0x8] sm:$0xff]
        %v184 = vld [vmem:[%s1 + $0x10] sm:$0xff]
        %v185 = vld [vmem:[%s1 + $0x18] sm:$0xff]
        %v186 = vld [vmem:[%s2] sm:$0x1]
        %v188 = vlaneseq
        %v189 = vshrl.u32 %v188, 7
        %v190 = vsub.s32 0, %v189
        %v191 = vrot.slane %v186, %v190
        %v194 = vsel %vm167, %v181, 0
        %196 = vmatprep.subr.mxu0 0.0
        %197 = vmatpush1.msra.mxu0 0.0
        %198 = vmatprep.subr.mxu0 0.0
        %199 = vmatpush1.msra.mxu0 0.0
        %200 = vmatprep.subr.mxu0 0.0
        %201 = vmatpush1.msra.mxu0 0.0
        %202 = vmatprep.subr.mxu0 0.0
        %203 = vmatpush1.msra.mxu0 0.0
        %204 = vmatprep.subr.mxu0 0.0
        %205 = vmatpush1.msra.mxu0 0.0
        %206 = vmatprep.subr.mxu0 0.0
        %207 = vmatpush1.msra.mxu0 0.0
        %208 = vmatprep.subr.mxu0 0.0
        %209 = vmatpush1.msra.mxu0 0.0
        %210 = vmatprep.subr.mxu0 0.0
        %211 = vmatpush1.msra.mxu0 0.0
        %212 = vmatprep.subr.mxu0 0.0
        %213 = vmatpush1.msra.mxu0 0.0
        %214 = vmatprep.subr.mxu0 0.0
        %215 = vmatpush1.msra.mxu0 0.0
        %216 = vmatprep.subr.mxu0 0.0
        %217 = vmatpush1.msra.mxu0 0.0
        %218 = vmatprep.subr.mxu0 0.0
        %219 = vmatpush1.msra.mxu0 0.0
        %220 = vmatprep.subr.mxu0 0.0
        %221 = vmatpush1.msra.mxu0 %v185
        %222 = vmatprep.subr.mxu0 0.0
        %223 = vmatpush1.msra.mxu0 %v184
        %224 = vmatprep.subr.mxu0 0.0
        %225 = vmatpush1.msra.mxu0 %v183
        %226 = vmatprep.subr.mxu0 0.0
        %227 = vmatpush1.msra.mxu0 %v182
        %228 = vmatprep.subr.mxu0 0.0
        %229 = vmatpush2.msra.mxu0 0.0
        %230 = vmatprep.subr.mxu0 0.0
        %231 = vmatpush2.msra.mxu0 0.0
        %232 = vmatprep.subr.mxu0 0.0
        %233 = vmatpush2.msra.mxu0 0.0
        %234 = vmatprep.subr.mxu0 0.0
        %235 = vmatpush2.msra.mxu0 0.0
        %236 = vmatprep.subr.mxu0 0.0
        %237 = vmatpush2.msra.mxu0 0.0
        %238 = vmatprep.subr.mxu0 0.0
        %239 = vmatpush2.msra.mxu0 0.0
        %240 = vmatprep.subr.mxu0 0.0
        %241 = vmatpush2.msra.mxu0 0.0
        %242 = vmatprep.subr.mxu0 0.0
        %243 = vmatpush2.msra.mxu0 0.0
        %244 = vmatprep.subr.mxu0 0.0
        %245 = vmatpush2.msra.mxu0 0.0
        %246 = vmatprep.subr.mxu0 0.0
        %247 = vmatpush2.msra.mxu0 0.0
        %248 = vmatprep.subr.mxu0 0.0
        %249 = vmatpush2.msra.mxu0 0.0
        %250 = vmatprep.subr.mxu0 0.0
        %251 = vmatpush2.msra.mxu0 0.0
        %252 = vmatprep.subr.mxu0 0.0
        %253 = vmatpush2.msra.mxu0 0.0
        %254 = vmatprep.subr.mxu0 0.0
        %255 = vmatpush2.msra.mxu0 0.0
        %256 = vmatprep.subr.mxu0 0.0
        %257 = vmatpush2.msra.mxu0 0.0
        %258 = vmatprep.subr.mxu0 0.0
        %259 = vmatpush2.msra.mxu0 0.0
        %260 = vmatprep.mubr.f32.mxu0 0.0
        %261 = vmatmul.mubr.f32.gmra.mxu0 %v194
        %v262 = vpop.f32.mrf.mxu0
        %v263 = vadd.f32 %v191, %v262
        %v264 = vpop.f32.mrf.mxu0
        %265 = vdwg.mxu0
        %vm266 = vcmask 130048
        %267 = vst.msk [vmem:[%s161] sm:$0xff] %vm266, %v263
        %s268 = sand.u32 %s93, 1
        %s269 = scalar_lea.sflag [#allocation3], %s268
        %s270 = sand.u32 %s93, 1
        %s271 = smul.addr %s270, 8
        %s272 = scalar_lea.vmem [#allocation2], %s271
        // Predicated region
        $region33: #{tpu_custom_call.1} parent=31 // pred_check
          %p273 = pneg %p103
        $region34: #{tpu_custom_call.1} parent=31 // pred_check_branch
          %275 = sbr.rel (%p273) target = $region36
        $region35: #{tpu_custom_call.1} parent=31 // pred_region
          %s277 = ssub.s32 128, 128
          %278 = vsyncadd %s269, %s277
          %s279 = smul.addr %s17, 128
          %s280 = scalar_lea.hbm %s3, %s279
          %s282 = sshll.u32 %s272, 4
          %s283 = int_to_ptr.vmem [resolvable:$true] %s282
          %285 = dma.vmem_to_hbm [thread:$0]  %s283, 128, %s280, %s269
        $region36: #{tpu_custom_call.1} parent=31 // pred_fallthru
          _
      $region32: #{tpu_custom_call.1} parent=5 // pred_fallthru
        _
      %p286 = scmp.le.s32.totalorder 2, %s12
      // Predicated region
      $region37: #{tpu_custom_call.1} parent=5 // pred_check
        %p287 = pneg %p286
      $region38: #{tpu_custom_call.1} parent=5 // pred_check_branch
        %289 = sbr.rel (%p287) target = $region40
      $region39: #{tpu_custom_call.1} parent=5 // pred_region
        %s290 = ssub.s32 %s12, 2
        // Predicated region
        $region41: #{tpu_custom_call.1} parent=39 // pred_check
          %p291 = pneg %p109
        $region42: #{tpu_custom_call.1} parent=39 // pred_check_branch
          %293 = sbr.rel (%p291) target = $region44
        $region43: #{tpu_custom_call.1} parent=39 // pred_region
          %s294 = sand.u32 %s94, 1
          %s295 = scalar_lea.sflag [#allocation3], %s294
          %s296 = sand.u32 %s94, 1
          %s297 = smul.addr %s296, 8
          %s298 = scalar_lea.vmem [#allocation2], %s297
          %299 = dma.done %s295, 128
        $region44: #{tpu_custom_call.1} parent=39 // pred_fallthru
          _
      $region40: #{tpu_custom_call.1} parent=5 // pred_fallthru
        _
    $region6: #{tpu_custom_call.1} parent=1 // loop_footer
      %s16 = sadd.s32 1, %s12
    $region7: #{tpu_custom_call.1} parent=1 // loop_footer_branch
      %11 = sbr.rel target = $region3
    $region8: #{tpu_custom_call.1} parent=1 // loop_exit
      _
    %300 = vsyncpa [#allocation3], 1
    %s301 = scalar_lea.sflag [#allocation3], 1
    %302 = vsyncpa %s301, 1

</llo_original>
